<compile_context>
chip_gen: v7x
topology: tpu7x:2x2x1
jax: 0.10.0
libtpu: 0.0.40
codegen_flags: <defaults>
</compile_context>

<pallas_src>
import functools
import math

import jax
import jax.numpy as jnp
from jax import lax
from jax.experimental import pallas as pl
from jax.experimental.pallas import tpu as pltpu


def _make_pos_embedding(emb_size: int, maxlen: int) -> jnp.ndarray:
    """Deterministic sin/cos positional table, identical to the torch __init__."""
    den = jnp.exp(-jnp.arange(0, emb_size, 2, dtype=jnp.float32)
                  * (math.log(10000.0) / emb_size))                    # (E/2,)
    pos = jnp.arange(0, maxlen, dtype=jnp.float32).reshape(maxlen, 1)  # (L,1)
    pe = jnp.zeros((maxlen, emb_size), dtype=jnp.float32)
    pe = pe.at[:, 0::2].set(jnp.sin(pos * den))
    pe = pe.at[:, 1::2].set(jnp.cos(pos * den))
    return pe                                                          # (L, E)


def _pe_kernel(seed_ref, x_ref, pos_ref, o_ref, *, dropout_p: float,
               apply_dropout: bool):
    # x_ref / pos_ref / o_ref: (ts, B*E) lane-dense 2-D tiles.
    x = x_ref[...].astype(jnp.float32)
    pe = pos_ref[...].astype(jnp.float32)
    y = x + pe

    if apply_dropout and dropout_p > 0.0:
        ts, L = x_ref.shape
        tile = pl.program_id(0).astype(jnp.uint32)
        # Global element counter for this tile (order-independent across tiles).
        rows = lax.broadcasted_iota(jnp.uint32, (ts, L), 0)
        cols = lax.broadcasted_iota(jnp.uint32, (ts, L), 1)
        gidx = (tile * jnp.uint32(ts) + rows) * jnp.uint32(L) + cols
        # Stateless counter-based PRNG: seed-mix + murmur3 fmix32 finalizer.
        h = gidx ^ (seed_ref[0].astype(jnp.uint32) * jnp.uint32(0x9E3779B9))
        h ^= h >> 16
        h *= jnp.uint32(0x85EBCA6B)
        h ^= h >> 13
        h *= jnp.uint32(0xC2B2AE35)
        h ^= h >> 16
        # Integer-space threshold compare: keep with probability (1 - p).
        thresh = jnp.uint32(min(int(round(dropout_p * (1 << 32))), (1 << 32) - 1))
        keep = h >= thresh
        scale = jnp.float32(1.0 / (1.0 - dropout_p))
        y = jnp.where(keep, y * scale, jnp.zeros_like(y))

    o_ref[...] = y.astype(o_ref.dtype)


def positional_encoding(token_embedding: jnp.ndarray,
                        pos_embedding: jnp.ndarray,
                        *,
                        dropout_p: float = 0.1,
                        training: bool = False,
                        seed: int = 0,
                        seq_tile: int | None = None,
                        donate_input: bool = False) -> jnp.ndarray:
    """token_embedding: (S, B, E).  pos_embedding: (maxlen, E) or (maxlen, 1, E)."""
    S, B, E = token_embedding.shape
    if pos_embedding.ndim == 3:          # torch buffer layout (maxlen, 1, E)
        pos_embedding = pos_embedding[:, 0, :]
    maxlen, Ep = pos_embedding.shape
    assert Ep == E, f"emb_size mismatch: {Ep} vs {E}"
    assert S <= maxlen, f"seq_len {S} exceeds maxlen {maxlen}"
    assert 0.0 <= dropout_p < 1.0, "dropout_p must be in [0, 1)"

    L = B * E
    dtype = token_embedding.dtype
    x2d = token_embedding.reshape(S, L)
    # Pre-tiled, lane-dense positional slab (broadcast over batch folded into lanes).
    pos2d = jnp.tile(pos_embedding[:S], (1, B)).astype(dtype)           # (S, B*E)

    # Tile the seq axis to ~2 MiB per x block: with double-buffered in/out that is
    # <~8 MiB in flight -> fits v5e's 16 MiB scoped default and v7x's 64 MiB VMEM.
    itemsize = jnp.dtype(dtype).itemsize
    if seq_tile is None:
        target_bytes = 2 * 1024 * 1024
        ts = max(1, target_bytes // max(1, L * itemsize))
    else:
        ts = int(seq_tile)
    ts = min(ts, S)
    if ts < S:
        ts = max(8, (ts // 8) * 8)       # sublane-aligned unless full extent
    grid = (pl.cdiv(S, ts),)             # ragged tail handled by block padding

    kernel = functools.partial(_pe_kernel,
                               dropout_p=float(dropout_p),
                               apply_dropout=bool(training))
    seed_arr = jnp.array([seed], dtype=jnp.int32)

    out2d = pl.pallas_call(
        kernel,
        out_shape=jax.ShapeDtypeStruct((S, L), dtype),
        grid_spec=pltpu.PrefetchScalarGridSpec(
            num_scalar_prefetch=1,
            grid=grid,
            in_specs=[
                pl.BlockSpec((ts, L), lambda i, seed: (i, 0)),   # token embeddings
                pl.BlockSpec((ts, L), lambda i, seed: (i, 0)),   # positional slab
            ],
            out_specs=pl.BlockSpec((ts, L), lambda i, seed: (i, 0)),
        ),
        compiler_params=pltpu.CompilerParams(
            # Dropout mask depends only on (seed, tile index, element index), so the
            # grid is order-independent -> shard over both TCs on v7x.
            dimension_semantics=("parallel",)),
        # Optional: alias the token embeddings into the output (saves one HBM
        # allocation when the caller does not need the pre-PE embeddings).
        input_output_aliases=({1: 0} if donate_input else {}),
    )(seed_arr, x2d, pos2d)

    return out2d.reshape(S, B, E)


if __name__ == "__main__":
    SEQ, BATCH, EMB = 8, 2, 32
    MAXLEN = 64
    DROPOUT_P = 0.1

    key = jax.random.PRNGKey(0)
    token_embedding = jax.random.normal(key, (SEQ, BATCH, EMB), dtype=jnp.float32)
    pos_embedding = _make_pos_embedding(EMB, MAXLEN)
    ref = token_embedding + pos_embedding[:SEQ][:, None, :]

    # Eval mode: dropout is identity -> output = x + pos_embedding[:S] (bcast over B).
    out_eval = positional_encoding(token_embedding, pos_embedding,
                                   dropout_p=DROPOUT_P, training=False)
    out_eval = jax.block_until_ready(out_eval)
    assert out_eval.shape == (SEQ, BATCH, EMB)
    assert jnp.allclose(out_eval, ref, atol=1e-6), "eval-mode mismatch"

    # bf16 I/O path (same kernel, math in f32 in-register).
    out_bf16 = positional_encoding(token_embedding.astype(jnp.bfloat16),
                                   pos_embedding, dropout_p=DROPOUT_P,
                                   training=False)
    out_bf16 = jax.block_until_ready(out_bf16)
    assert out_bf16.dtype == jnp.bfloat16
    assert jnp.allclose(out_bf16.astype(jnp.float32), ref, atol=3e-2, rtol=3e-2), \
        "bf16 eval-mode mismatch"

    # Train mode: in-kernel stateless-hash dropout.  Every element must be either
    # dropped (0) or the reference value scaled by 1/(1-p).
    out_train = positional_encoding(token_embedding, pos_embedding,
                                    dropout_p=DROPOUT_P, training=True, seed=123)
    out_train = jax.block_until_ready(out_train)
    assert out_train.shape == (SEQ, BATCH, EMB)
    scale = 1.0 / (1.0 - DROPOUT_P)
    is_dropped = jnp.isclose(out_train, 0.0, atol=1e-6)
    is_scaled = jnp.isclose(out_train, ref * scale, atol=1e-5, rtol=1e-5)
    assert bool(jnp.all(is_dropped | is_scaled)), "train-mode dropout mismatch"
    assert bool(jnp.any(~is_dropped)), "dropout removed everything (p should be 0.1)"

    print("KERNEL_OK")
</pallas_src>

<mosaic_0001>
module attributes {stable_mosaic.version = 11 : i64} {
  func.func @_pe_kernel(%arg0: i32, %arg1: memref<1xi32, #tpu.memory_space<smem>>, %arg2: memref<8x64xf32, #tpu.memory_space<vmem>>, %arg3: memref<8x64xf32, #tpu.memory_space<vmem>>, %arg4: memref<8x64xf32, #tpu.memory_space<vmem>>) attributes {dimension_semantics = [#tpu.dimension_semantics<parallel>], iteration_bounds = array<i64: 1>, scalar_prefetch = 1 : i64, scratch_operands = 0 : i64, tpu.core_type = #tpu.core_type<tc>, window_params = [{transform_indices = @transform_0, window_bounds = array<i64: 8, 64>}, {transform_indices = @transform_1, window_bounds = array<i64: 8, 64>}, {transform_indices = @transform_2, window_bounds = array<i64: 8, 64>}]} {
    %c0 = arith.constant 0 : index
    %c0_0 = arith.constant 0 : index
    %0 = vector.load %arg2[%c0, %c0_0] : memref<8x64xf32, #tpu.memory_space<vmem>>, vector<8x64xf32>
    %c0_1 = arith.constant 0 : index
    %c0_2 = arith.constant 0 : index
    %1 = vector.load %arg3[%c0_1, %c0_2] : memref<8x64xf32, #tpu.memory_space<vmem>>, vector<8x64xf32>
    %2 = arith.addf %0, %1 : vector<8x64xf32>
    %c0_3 = arith.constant 0 : index
    %c0_4 = arith.constant 0 : index
    %3 = vector.load %arg4[%c0_3, %c0_4] : memref<8x64xf32, #tpu.memory_space<vmem>>, vector<8x64xf32>
    tpu.vector_store %arg4[%c0_3, %c0_4], %2 {strides = array<i32>} : memref<8x64xf32, #tpu.memory_space<vmem>>, vector<8x64xf32>,
    return
  }
  func.func @transform_0(%arg0: i32, %arg1: memref<1xi32, #tpu.memory_space<smem>>) -> (i32, i32) {
    %c0_i32 = arith.constant 0 : i32
    %c0_i32_0 = arith.constant 0 : i32
    return %arg0, %c0_i32 : i32, i32
  }
  func.func @transform_1(%arg0: i32, %arg1: memref<1xi32, #tpu.memory_space<smem>>) -> (i32, i32) {
    %c0_i32 = arith.constant 0 : i32
    %c0_i32_0 = arith.constant 0 : i32
    return %arg0, %c0_i32 : i32, i32
  }
  func.func @transform_2(%arg0: i32, %arg1: memref<1xi32, #tpu.memory_space<smem>>) -> (i32, i32) {
    %c0_i32 = arith.constant 0 : i32
    %c0_i32_0 = arith.constant 0 : i32
    return %arg0, %c0_i32 : i32, i32
  }
}

</mosaic_0001>

<llo_original>
// kernel: tpu_custom_call.1
$region0: #{tpu_custom_call.1}
  #allocation0 [shape = 'u32[]', space=smem, size = 0x4, offset = 0x4, fixed_abs, tag = 'smem constant byte address 0x4 - core index']
  #allocation1 [shape = 'u32[144,128]{1,0:T(1,128)}', space=vmem, size = 0x12000, scoped, tag = 'internal scratch']
  #allocation2 [shape = 's32[1]{0}', space=sflag, size = 0x4, scoped, tag = 'scoped memory for tpu_custom_call.1']
  #allocation3 [shape = 's32[1]{0:T(128)S(6)}', space=smem, size = 0x200, scoped, tag = 'prefetched SMEM operand 0']
  %s0 = inlined_call_operand.<no memory space> [shape: s32[1], index: 0, kind: input, shape index: {}]
  %s1 = inlined_call_operand.hbm [shape: f32[8,64], index: 1, kind: input, shape index: {}]
  %s2 = inlined_call_operand.hbm [shape: f32[8,64], index: 2, kind: input, shape index: {}]
  %s3 = inlined_call_operand.hbm [shape: f32[8,64], index: 3, kind: output, shape index: {}]
  %s4 = sld [smem:[#allocation0]]
  $region26: #{tpu_custom_call.1} parent=0
    _
  %s6 = ssub.s32 1, %s4
  %s7 = scalar_select 0, %s6, %s4
  %8 = sst [smem:[#allocation3]] %s0
  $region1: #{tpu_custom_call.1} parent=0
    #allocation4 [shape = 'u8[4096]{0}', space=vmem, size = 0x1000, scoped, tag = 'input window, operand 1, single buffered']
    #allocation5 [shape = 's32[1]{0}', space=sflag, size = 0x4, scoped, tag = 'scoped memory for tpu_custom_call.1']
    #allocation6 [shape = 's32[1]{0}', space=sflag, size = 0x4, scoped, tag = 'scoped memory for tpu_custom_call.1']
    #allocation7 [shape = 'u8[4096]{0}', space=vmem, size = 0x1000, scoped, tag = 'input window, operand 2, single buffered']
    #allocation8 [shape = 's32[1]{0}', space=sflag, size = 0x4, scoped, tag = 'scoped memory for tpu_custom_call.1']
    #allocation9 [shape = 'u8[4096]{0}', space=vmem, size = 0x1000, scoped, tag = 'output window, operand 0, single buffered']
    %9 = vsyncpa [#allocation5], 0
    %10 = vsyncpa [#allocation8], 0
    %11 = vsyncpa [#allocation6], 0
    // Predicated region
    $region2: #{tpu_custom_call.1} parent=1 // pred_check
      _
    $region3: #{tpu_custom_call.1} parent=1 // pred_check_branch
      %13 = sbr.rel (0) target = $region5
    $region4: #{tpu_custom_call.1} parent=1 // pred_region
      %s15 = ssub.s32 128, 128
      %16 = vsyncadd [#allocation5], %s15
      %s18 = sshll.u32 [#allocation4], 4
      %s19 = int_to_ptr.vmem [resolvable:$true] %s18
      %21 = dma.hbm_to_vmem [thread:$0]  %s1, 128, %s19, [#allocation5]
    $region5: #{tpu_custom_call.1} parent=1 // pred_fallthru
      _
    // Predicated region
    $region6: #{tpu_custom_call.1} parent=1 // pred_check
      _
    $region7: #{tpu_custom_call.1} parent=1 // pred_check_branch
      %23 = sbr.rel (0) target = $region9
    $region8: #{tpu_custom_call.1} parent=1 // pred_region
      %s25 = ssub.s32 128, 128
      %26 = vsyncadd [#allocation8], %s25
      %s28 = sshll.u32 [#allocation7], 4
      %s29 = int_to_ptr.vmem [resolvable:$true] %s28
      %31 = dma.hbm_to_vmem [thread:$0]  %s2, 128, %s29, [#allocation8]
    $region9: #{tpu_custom_call.1} parent=1 // pred_fallthru
      _
    // Predicated region
    $region10: #{tpu_custom_call.1} parent=1 // pred_check
      _
    $region11: #{tpu_custom_call.1} parent=1 // pred_check_branch
      %33 = sbr.rel (0) target = $region13
    $region12: #{tpu_custom_call.1} parent=1 // pred_region
      %34 = dma.done [#allocation5], 128
    $region13: #{tpu_custom_call.1} parent=1 // pred_fallthru
      _
    // Predicated region
    $region14: #{tpu_custom_call.1} parent=1 // pred_check
      _
    $region15: #{tpu_custom_call.1} parent=1 // pred_check_branch
      %36 = sbr.rel (0) target = $region17
    $region16: #{tpu_custom_call.1} parent=1 // pred_region
      %37 = dma.done [#allocation8], 128
    $region17: #{tpu_custom_call.1} parent=1 // pred_fallthru
      _
    %v38 = vld [vmem:[#allocation4] sm:$0xff]
    %v39 = vld [vmem:[#allocation7] sm:$0xff]
    %v40 = vadd.f32 %v38, %v39
    %vm41 = vcmask 523264
    %42 = vst.msk [vmem:[#allocation9] sm:$0xff] %vm41, %v40
    // Predicated region
    $region18: #{tpu_custom_call.1} parent=1 // pred_check
      _
    $region19: #{tpu_custom_call.1} parent=1 // pred_check_branch
      %44 = sbr.rel (0) target = $region21
    $region20: #{tpu_custom_call.1} parent=1 // pred_region
      %s46 = ssub.s32 128, 128
      %47 = vsyncadd [#allocation6], %s46
      %s49 = sshll.u32 [#allocation9], 4
      %s50 = int_to_ptr.vmem [resolvable:$true] %s49
      %52 = dma.vmem_to_hbm [thread:$0]  %s50, 128, %s3, [#allocation6]
    $region21: #{tpu_custom_call.1} parent=1 // pred_fallthru
      _
    // Predicated region
    $region22: #{tpu_custom_call.1} parent=1 // pred_check
      _
    $region23: #{tpu_custom_call.1} parent=1 // pred_check_branch
      %54 = sbr.rel (0) target = $region25
    $region24: #{tpu_custom_call.1} parent=1 // pred_region
      %55 = dma.done [#allocation6], 128
    $region25: #{tpu_custom_call.1} parent=1 // pred_fallthru
      _
    %56 = vsyncpa [#allocation5], 1
    %57 = vsyncpa [#allocation8], 1
    %58 = vsyncpa [#allocation6], 1

</llo_original>
